<compile_context>
chip_gen: v7x
topology: tpu7x:2x2x1
jax: 0.10.0
libtpu: 0.0.40
codegen_flags: <defaults>
</compile_context>

<pallas_src>
from functools import lru_cache, partial

import numpy as np
import jax
import jax.numpy as jnp
from jax import lax
from jax.experimental import pallas as pl
from jax.experimental.pallas import tpu as pltpu


# ----------------------------------------------------------------------------
# Trace-time constant builders / parameter folding.
# ----------------------------------------------------------------------------
def _bilinear_matrix(n: int) -> np.ndarray:
    """1-D bilinear x2 interpolation matrix (2n, n), PyTorch align_corners=False."""
    m = np.zeros((2 * n, n), dtype=np.float32)
    for d in range(2 * n):
        src = max((d + 0.5) / 2.0 - 0.5, 0.0)       # PyTorch clamps negative src
        i0 = min(int(np.floor(src)), n - 1)
        i1 = min(i0 + 1, n - 1)
        f = src - i0
        m[d, i0] += 1.0 - f
        m[d, i1] += f
    return m


def fold_bn(gamma, beta, mean, var, eps=1e-5):
    scale = gamma / jnp.sqrt(var + eps)
    return scale, beta - mean * scale


def _conv3x3_taps(w, scale, dtype):
    """(Cout, Cin, 3, 3) PyTorch weight * BN scale -> (9, Cout, Cin), tap = ky*3+kx."""
    co, ci = w.shape[0], w.shape[1]
    w = w * scale[:, None, None, None]
    return jnp.transpose(w, (2, 3, 0, 1)).reshape(9, co, ci).astype(dtype)


# ----------------------------------------------------------------------------
# One-off probe: does pltpu.roll follow jnp.roll's sign convention?
# (Makes the conv-tap shifts robust to either convention.)
# ----------------------------------------------------------------------------
@lru_cache(maxsize=None)
def _pltpu_roll_matches_jnp() -> bool:
    def k(x_ref, o_ref):
        o_ref[...] = pltpu.roll(x_ref[...], 1, axis=1)

    x = jnp.tile(jnp.arange(128, dtype=jnp.float32)[None, :], (8, 1))
    r = pl.pallas_call(k, out_shape=jax.ShapeDtypeStruct((8, 128), jnp.float32))(x)
    # jnp.roll(x, 1, axis=1)[0, 1] == x[0, 0] == 0.0
    return bool(np.asarray(r)[0, 1] == 0.0)


# ----------------------------------------------------------------------------
# Fused decoder kernel factory (one grid step == G samples folded into lanes).
# ----------------------------------------------------------------------------
def _make_decoder_kernel(cin, c0, c1, c2, cout, G, H, W, op_dtype, roll_like_jnp):
    H2, W2, H4, W4 = 2 * H, 2 * W, 4 * H, 4 * W
    N1, N2 = G * H2 * W2, G * H4 * W4
    f32 = jnp.float32

    def lane_roll(v, k):
        """jnp.roll(v, k, axis=-1) on the lane axis via the XLU (sign-safe)."""
        n = v.shape[-1]
        k = k % n
        if k == 0:
            return v
        if not roll_like_jnp:
            k = (n - k) % n
        return pltpu.roll(v, k, axis=v.ndim - 1)

    def upsample2x(z, uw_ref, h_img):
        """Bilinear x2 (align_corners=False).  z: (R, w) rows ordered (c, g, h).
        Width: one (w, 2w) matmul.  Height: 2-tap stencil with edge clamp.
        Returns (R, 4w): each row holds [output row 2h | output row 2h+1], so a
        plain reshape yields the lane-dense upsampled activation."""
        R = z.shape[0]
        zw = jnp.dot(z.astype(op_dtype), uw_ref[...],
                     preferred_element_type=f32)                       # (R, 2w)
        hh = lax.broadcasted_iota(jnp.int32, (R, 1), 0) % h_img
        up = jnp.concatenate([zw[:1], zw[:-1]], axis=0)                # z[h-1]
        dn = jnp.concatenate([zw[1:], zw[-1:]], axis=0)                # z[h+1]
        up = jnp.where(hh == 0, zw, up)                                # clamp top
        dn = jnp.where(hh == h_img - 1, zw, dn)                        # clamp bottom
        even = 0.75 * zw + 0.25 * up                                   # out row 2h
        odd = 0.75 * zw + 0.25 * dn                                    # out row 2h+1
        return jnp.concatenate([even, odd], axis=1)                    # (R, 4w)

    def conv3x3_bn_relu(x, w_ref, b_ref, hc, wc, n):
        """x: (Cin, n) lane-dense, n = G*hc*wc.  3x3 conv (pad=1) with folded BN
        + ReLU as 9 accumulated (Cout, Cin)@(Cin, n) MXU matmuls; taps are lane
        rolls, zero padding is an iota boundary mask (no pad / im2col copies)."""
        co = w_ref.shape[1]
        p = lax.broadcasted_iota(jnp.int32, (1, n), 1)
        wcol = p % wc
        hrow = (p // wc) % hc
        acc = jnp.zeros((co, n), f32)
        t = 0
        for dy in (-1, 0, 1):
            vh = jnp.logical_and(hrow + dy >= 0, hrow + dy < hc)
            for dx in (-1, 0, 1):
                if dy == 0 and dx == 0:
                    tap = x
                else:
                    vw = jnp.logical_and(wcol + dx >= 0, wcol + dx < wc)
                    tap = jnp.where(jnp.logical_and(vh, vw),
                                    lane_roll(x, -(dy * wc + dx)), 0.0)
                acc = acc + jnp.dot(w_ref[t], tap.astype(op_dtype),
                                    preferred_element_type=f32)
                t += 1
        return jnp.maximum(acc + b_ref[...], 0.0)

    def kernel(x_ref, uw1_ref, uw2_ref, w1_ref, b1_ref, w2_ref, b2_ref,
               w3_ref, b3_ref, w4_ref, o_ref):
        x = x_ref[...].astype(f32)                               # (cin*G*H, W)
        h = upsample2x(x, uw1_ref, H).reshape(cin, N1)           # lane-dense (cin, N1)
        h = conv3x3_bn_relu(h, w1_ref, b1_ref, H2, W2, N1)       # (c0, N1)
        h = conv3x3_bn_relu(h, w2_ref, b2_ref, H2, W2, N1)       # (c1, N1)
        z = h.reshape(c1 * G * H2, W2)                           # rows for upsample
        h = upsample2x(z, uw2_ref, H2).reshape(c1, N2)           # lane-dense (c1, N2)
        h = conv3x3_bn_relu(h, w3_ref, b3_ref, H4, W4, N2)       # (c2, N2)
        y = jnp.dot(w4_ref[...], h.astype(op_dtype),             # 1x1 conv
                    preferred_element_type=f32)
        o_ref[...] = jnp.maximum(y, 0.0).astype(o_ref.dtype)     # ReLU, lane-dense store

    return kernel


# ----------------------------------------------------------------------------
# Wrapper: parameter folding + pallas_call (all constant folding at trace time).
# ----------------------------------------------------------------------------
@partial(jax.jit, static_argnames=("num_blocks", "use_bf16", "roll_like_jnp"))
def _counting_head_impl(x, params, num_blocks, use_bf16, roll_like_jnp):
    B, cin, H, W = x.shape
    c0 = params["w1"].shape[0]
    c1 = params["w2"].shape[0]
    c2 = params["w3"].shape[0]
    cout = params["w4"].shape[0]
    if B % num_blocks != 0:
        raise ValueError("batch must be divisible by num_blocks")
    G = B // num_blocks
    H2, W2, H4, W4 = 2 * H, 2 * W, 4 * H, 4 * W
    N2 = G * H4 * W4
    op_dtype = jnp.bfloat16 if use_bf16 else jnp.float32

    # Tiny width-interp constants (the big block-diag height constants are gone).
    uw1 = jnp.asarray(_bilinear_matrix(W).T).astype(op_dtype)       # (W, 2W)
    uw2 = jnp.asarray(_bilinear_matrix(W2).T).astype(op_dtype)      # (2W, 4W)

    # Fold inference-mode BatchNorm into conv weights / per-channel bias.
    s1, bb1 = fold_bn(params["bn1_gamma"], params["bn1_beta"],
                      params["bn1_mean"], params["bn1_var"])
    s2, bb2 = fold_bn(params["bn2_gamma"], params["bn2_beta"],
                      params["bn2_mean"], params["bn2_var"])
    s3, bb3 = fold_bn(params["bn3_gamma"], params["bn3_beta"],
                      params["bn3_mean"], params["bn3_var"])
    w1m = _conv3x3_taps(params["w1"], s1, op_dtype)                  # (9, c0, cin)
    w2m = _conv3x3_taps(params["w2"], s2, op_dtype)                  # (9, c1, c0)
    w3m = _conv3x3_taps(params["w3"], s3, op_dtype)                  # (9, c2, c1)
    w4m = params["w4"].reshape(cout, c2).astype(op_dtype)            # (cout, c2)
    b1 = bb1.reshape(c0, 1).astype(jnp.float32)
    b2 = bb2.reshape(c1, 1).astype(jnp.float32)
    b3 = bb3.reshape(c2, 1).astype(jnp.float32)

    # Input layout plumbing (cheap wrapper transpose): rows ordered (c, g, h).
    xr = jnp.transpose(x.reshape(num_blocks, G, cin, H, W), (0, 2, 1, 3, 4))
    xr = xr.reshape(num_blocks, cin * G * H, W)

    kernel = _make_decoder_kernel(cin, c0, c1, c2, cout, G, H, W,
                                  op_dtype, roll_like_jnp)

    def const_spec(a):
        zeros = (0,) * a.ndim
        return pl.BlockSpec(a.shape, lambda i: zeros)

    flops = 2 * B * (cin * H * W * W2           # upsample-1 width matmul
                     + 9 * c0 * cin * H2 * W2   # conv1
                     + 9 * c1 * c0 * H2 * W2    # conv2
                     + c1 * H2 * W2 * W4        # upsample-2 width matmul
                     + 9 * c2 * c1 * H4 * W4    # conv3
                     + cout * c2 * H4 * W4)     # conv4 (1x1)
    bytes_accessed = 4 * (x.size + B * cout * H4 * W4) + 4 * int(
        uw1.size + uw2.size + w1m.size + w2m.size + w3m.size + w4m.size
        + b1.size + b2.size + b3.size)

    out = pl.pallas_call(
        kernel,
        out_shape=jax.ShapeDtypeStruct((num_blocks, cout, N2), x.dtype),
        grid=(num_blocks,),
        in_specs=[
            pl.BlockSpec((None, cin * G * H, W), lambda i: (i, 0, 0)),
            const_spec(uw1), const_spec(uw2),
            const_spec(w1m), const_spec(b1),
            const_spec(w2m), const_spec(b2),
            const_spec(w3m), const_spec(b3),
            const_spec(w4m),
        ],
        out_specs=pl.BlockSpec((None, cout, N2), lambda i: (i, 0, 0)),
        compiler_params=pltpu.CompilerParams(
            dimension_semantics=("parallel",),
            vmem_limit_bytes=32 * 1024 * 1024),
        cost_estimate=pl.CostEstimate(flops=int(flops), transcendentals=0,
                                      bytes_accessed=int(bytes_accessed)),
    )(xr, uw1, uw2, w1m, b1, w2m, b2, w3m, b3, w4m)

    # Lane-dense (nb, cout, G*4H*4W) -> NCHW (B, cout, 4H, 4W) (cheap plumbing).
    out = jnp.transpose(out.reshape(num_blocks, cout, G, H4, W4), (0, 2, 1, 3, 4))
    return out.reshape(B, cout, H4, W4)


def counting_head_forward(x, params, num_blocks=1, use_bf16=False):
    """CountingHead.decoder forward (inference).  x, output: NCHW.

    num_blocks=1: whole batch folded into the lane axis (best on v5e/v6e,
    single TensorCore).  num_blocks=2: batch split over a "parallel" grid
    axis so it shards across the two TensorCores of v7x.
    """
    return _counting_head_impl(x, params, num_blocks=num_blocks,
                               use_bf16=use_bf16,
                               roll_like_jnp=_pltpu_roll_matches_jnp())


# ----------------------------------------------------------------------------
# Pure-JAX reference (same bilinear convention) for correctness self-check.
# ----------------------------------------------------------------------------
def _reference_forward(x, params):
    hp = lax.Precision.HIGHEST

    def up(v):
        _, _, Hc, Wc = v.shape
        uh = jnp.asarray(_bilinear_matrix(Hc))
        uw = jnp.asarray(_bilinear_matrix(Wc))
        v = jnp.einsum('gh,bchw->bcgw', uh, v, precision=hp)
        v = jnp.einsum('dw,bchw->bchd', uw, v, precision=hp)
        return v

    def conv(v, w, pad):
        return lax.conv_general_dilated(
            v, w, window_strides=(1, 1), padding=[(pad, pad), (pad, pad)],
            dimension_numbers=('NCHW', 'OIHW', 'NCHW'), precision=hp)

    def bn(v, g, b, m, var, eps=1e-5):
        s = g / jnp.sqrt(var + eps)
        return v * s[None, :, None, None] + (b - m * s)[None, :, None, None]

    h = up(x)
    h = jax.nn.relu(bn(conv(h, params["w1"], 1), params["bn1_gamma"],
                       params["bn1_beta"], params["bn1_mean"], params["bn1_var"]))
    h = jax.nn.relu(bn(conv(h, params["w2"], 1), params["bn2_gamma"],
                       params["bn2_beta"], params["bn2_mean"], params["bn2_var"]))
    h = up(h)
    h = jax.nn.relu(bn(conv(h, params["w3"], 1), params["bn3_gamma"],
                       params["bn3_beta"], params["bn3_mean"], params["bn3_var"]))
    h = jax.nn.relu(conv(h, params["w4"], 0))
    return h


# ----------------------------------------------------------------------------
# Deterministic synthetic parameters.
# ----------------------------------------------------------------------------
def init_params(key, in_channels, inter_layer, out_channels):
    ks = jax.random.split(key, 8)
    c0, c1, c2 = inter_layer
    params = {
        "w1": 0.1 * jax.random.normal(ks[0], (c0, in_channels, 3, 3), jnp.float32),
        "w2": 0.1 * jax.random.normal(ks[1], (c1, c0, 3, 3), jnp.float32),
        "w3": 0.1 * jax.random.normal(ks[2], (c2, c1, 3, 3), jnp.float32),
        "w4": 0.1 * jax.random.normal(ks[3], (out_channels, c2, 1, 1), jnp.float32),
    }
    for i, c in zip((1, 2, 3), (c0, c1, c2)):
        params[f"bn{i}_gamma"] = jnp.ones((c,), jnp.float32)
        params[f"bn{i}_beta"] = jnp.zeros((c,), jnp.float32)
        params[f"bn{i}_mean"] = 0.05 * jax.random.normal(ks[3 + i], (c,), jnp.float32)
        params[f"bn{i}_var"] = jnp.ones((c,), jnp.float32) + 0.1 * jnp.abs(
            jax.random.normal(ks[3 + i], (c,), jnp.float32))
    return params


if __name__ == "__main__":
    # config.in_channels = 4, config.inter_layer = [8, 8, 8], config.out_channels = 2
    in_channels, inter_layer, out_channels = 4, (8, 8, 8), 2
    B, H, W = 2, 16, 16

    key = jax.random.PRNGKey(0)
    kx, kp = jax.random.split(key)
    x = jax.random.normal(kx, (B, in_channels, H, W), jnp.float32)    # NCHW input
    params = init_params(kp, in_channels, inter_layer, out_channels)

    ref = jax.block_until_ready(_reference_forward(x, params))

    # v5e / v6e configuration: batch folded into the lane axis, one grid step.
    out = jax.block_until_ready(counting_head_forward(x, params))
    assert out.shape == (B, out_channels, 4 * H, 4 * W), out.shape
    assert bool(jnp.all(jnp.isfinite(out)))
    assert bool(jnp.all(out >= 0.0))                                  # final ReLU
    np.testing.assert_allclose(np.asarray(out), np.asarray(ref), rtol=1e-3, atol=1e-3)

    # v7x configuration: batch split over a size-2 "parallel" grid axis (2 TCs).
    out2 = jax.block_until_ready(counting_head_forward(x, params, num_blocks=2))
    np.testing.assert_allclose(np.asarray(out2), np.asarray(ref), rtol=1e-3, atol=1e-3)

    # bf16 matmul operands (f32 accumulation): looser, bf16-appropriate tolerance.
    out_bf = jax.block_until_ready(counting_head_forward(x, params, use_bf16=True))
    np.testing.assert_allclose(np.asarray(out_bf), np.asarray(ref), rtol=5e-2, atol=5e-2)

    print("KERNEL_OK")
</pallas_src>

<mosaic_0001>
module attributes {stable_mosaic.version = 11 : i64} {
  func.func @k(%arg0: memref<8x128xf32, #tpu.memory_space<vmem>>, %arg1: memref<8x128xf32, #tpu.memory_space<vmem>>) attributes {dimension_semantics = [], scalar_prefetch = 0 : i64, scratch_operands = 0 : i64, tpu.core_type = #tpu.core_type<tc>} {
    %c0 = arith.constant 0 : index
    %c0_0 = arith.constant 0 : index
    %0 = vector.load %arg0[%c0, %c0_0] : memref<8x128xf32, #tpu.memory_space<vmem>>, vector<8x128xf32>
    %c1_i32 = arith.constant 1 : i32
    %1 = tpu.dynamic_rotate %0 by %c1_i32 dim 1 : vector<8x128xf32>, i32 -> vector<8x128xf32>
    %c0_1 = arith.constant 0 : index
    %c0_2 = arith.constant 0 : index
    %2 = vector.load %arg1[%c0_1, %c0_2] : memref<8x128xf32, #tpu.memory_space<vmem>>, vector<8x128xf32>
    tpu.vector_store %arg1[%c0_1, %c0_2], %1 {strides = array<i32>} : memref<8x128xf32, #tpu.memory_space<vmem>>, vector<8x128xf32>,
    return
  }
}

</mosaic_0001>

<llo_original>
// kernel: tpu_custom_call.1
$region0: #{tpu_custom_call.1}
  #allocation0 [shape = 'u32[]', space=smem, size = 0x4, offset = 0x4, fixed_abs, tag = 'smem constant byte address 0x4 - core index']
  #allocation1 [shape = 'u32[144,128]{1,0:T(1,128)}', space=vmem, size = 0x12000, scoped, tag = 'internal scratch']
  %s0 = inlined_call_operand.hbm [shape: f32[8,128], index: 0, kind: input, shape index: {}]
  %s1 = inlined_call_operand.hbm [shape: f32[8,128], index: 1, kind: output, shape index: {}]
  %s2 = sld [smem:[#allocation0]]
  $region18: #{tpu_custom_call.1} parent=0
    _
  %s4 = ssub.s32 1, %s2
  %s5 = scalar_select 0, %s4, %s2
  $region1: #{tpu_custom_call.1} parent=0
    #allocation2 [shape = 'u8[4096]{0}', space=vmem, size = 0x1000, scoped, tag = 'input window, operand 0, single buffered']
    #allocation3 [shape = 's32[1]{0}', space=sflag, size = 0x4, scoped, tag = 'scoped memory for tpu_custom_call.1']
    #allocation4 [shape = 's32[1]{0}', space=sflag, size = 0x4, scoped, tag = 'scoped memory for tpu_custom_call.1']
    #allocation5 [shape = 'u8[4096]{0}', space=vmem, size = 0x1000, scoped, tag = 'output window, operand 0, single buffered']
    %6 = vsyncpa [#allocation3], 0
    %7 = vsyncpa [#allocation4], 0
    // Predicated region
    $region2: #{tpu_custom_call.1} parent=1 // pred_check
      _
    $region3: #{tpu_custom_call.1} parent=1 // pred_check_branch
      %9 = sbr.rel (0) target = $region5
    $region4: #{tpu_custom_call.1} parent=1 // pred_region
      %s11 = ssub.s32 128, 128
      %12 = vsyncadd [#allocation3], %s11
      %s14 = sshll.u32 [#allocation2], 4
      %s15 = int_to_ptr.vmem [resolvable:$true] %s14
      %17 = dma.hbm_to_vmem [thread:$0]  %s0, 128, %s15, [#allocation3]
    $region5: #{tpu_custom_call.1} parent=1 // pred_fallthru
      _
    // Predicated region
    $region6: #{tpu_custom_call.1} parent=1 // pred_check
      _
    $region7: #{tpu_custom_call.1} parent=1 // pred_check_branch
      %19 = sbr.rel (0) target = $region9
    $region8: #{tpu_custom_call.1} parent=1 // pred_region
      %20 = dma.done [#allocation3], 128
    $region9: #{tpu_custom_call.1} parent=1 // pred_fallthru
      _
    %v21 = vld [vmem:[#allocation2] sm:$0xff]
    %22 = vrot.lane.b32.xlu0 %v21, 1
    %v23 = vpop.permute.xlu0 %22
    %24 = vst [vmem:[#allocation5] sm:$0xff] %v23
    // Predicated region
    $region10: #{tpu_custom_call.1} parent=1 // pred_check
      _
    $region11: #{tpu_custom_call.1} parent=1 // pred_check_branch
      %26 = sbr.rel (0) target = $region13
    $region12: #{tpu_custom_call.1} parent=1 // pred_region
      %s28 = ssub.s32 128, 128
      %29 = vsyncadd [#allocation4], %s28
      %s31 = sshll.u32 [#allocation5], 4
      %s32 = int_to_ptr.vmem [resolvable:$true] %s31
      %34 = dma.vmem_to_hbm [thread:$0]  %s32, 128, %s1, [#allocation4]
    $region13: #{tpu_custom_call.1} parent=1 // pred_fallthru
      _
    // Predicated region
    $region14: #{tpu_custom_call.1} parent=1 // pred_check
      _
    $region15: #{tpu_custom_call.1} parent=1 // pred_check_branch
      %36 = sbr.rel (0) target = $region17
    $region16: #{tpu_custom_call.1} parent=1 // pred_region
      %37 = dma.done [#allocation4], 128
    $region17: #{tpu_custom_call.1} parent=1 // pred_fallthru
      _
    %38 = vsyncpa [#allocation3], 1
    %39 = vsyncpa [#allocation4], 1

</llo_original>
